<compile_context>
chip_gen: v7x
topology: tpu7x:2x2x1
jax: 0.10.0
libtpu: 0.0.40
codegen_flags: <defaults>
</compile_context>

<pallas_src>
import functools

import jax
import jax.numpy as jnp
from jax.experimental import pallas as pl
from jax.experimental.pallas import tpu as pltpu


def _fc_kernel(x_ref, w_ref, b_ref, y_ref, acc_ref):
    # x_ref: (tm, tk)   w_ref: (tk, tn)   b_ref: (1, tn)
    # y_ref: (tm, tn)   acc_ref: (tm, tn) f32 scratch
    k = pl.program_id(2)

    @pl.when(k == 0)
    def _init():
        # Fold the bias into the accumulator init: no epilogue add needed.
        acc_ref[...] = jnp.broadcast_to(
            b_ref[...].astype(jnp.float32), acc_ref.shape)

    w = w_ref[...]
    x = x_ref[...].astype(w.dtype)   # bf16 cast is a cheap VPU op; MXU-native path
    acc_ref[...] += jnp.dot(x, w, preferred_element_type=jnp.float32)

    @pl.when(k == pl.num_programs(2) - 1)
    def _store():
        y_ref[...] = acc_ref[...].astype(y_ref.dtype)


def pack_fc_params(weight, bias, *, weight_dtype=jnp.bfloat16,
                   lane_multiple=256, tk=512):
    """One-time packing of nn.Linear params for fc_xy (call OUTSIDE the hot path).

    weight: (N, K) in PyTorch convention, bias: (N,).
    Returns:
      w_kn : (K_pad, N_pad) weight, transposed, zero-padded, in `weight_dtype`.
      b_row: (1, N_pad) f32 bias, zero-padded.
    """
    N, K = weight.shape
    n_pad = lane_multiple * pl.cdiv(N, lane_multiple)     # MXU-width lane-dense N
    k_pad = K if K <= tk else tk * pl.cdiv(K, tk)          # K multiple of the K-tile
    w_kn = jnp.zeros((k_pad, n_pad), dtype=weight_dtype)
    w_kn = w_kn.at[:K, :N].set(weight.T.astype(weight_dtype))
    b_row = jnp.zeros((1, n_pad), dtype=jnp.float32)
    b_row = b_row.at[0, :N].set(bias.astype(jnp.float32))
    return w_kn, b_row


@functools.partial(jax.jit, static_argnames=("n_out", "tm"))
def fc_xy(x, w_kn, b_row, *, n_out, tm=256):
    """Forward of FC_xy: returns (x_flat, y) with y = x_flat @ W^T + b.

    w_kn / b_row come from pack_fc_params (pre-transposed / padded / cast).
    """
    # Flatten (metadata-only in XLA) -- wrapper-side, never enters the kernel.
    if x.ndim > 2:
        x = x.reshape(x.shape[0], -1)
    M, K = x.shape
    k_pad, n_pad = w_kn.shape

    # Zero-pad x along K only if the packer padded K (the padded weight rows
    # are zero, so the padded x columns contribute nothing).
    x_mm = x if k_pad == K else jnp.pad(x, ((0, 0), (0, k_pad - K)))

    # Tile sizes: ~4.5 MiB of double-buffered VMEM at the defaults; safe on
    # v5e (16 MiB scoped default), v6e (32 MiB) and v7x (64 MiB physical).
    tm_ = min(tm, M)
    tk = k_pad if k_pad <= 512 else 512
    tn = n_pad if n_pad <= 512 else (512 if n_pad % 512 == 0 else 256)

    grid_m = pl.cdiv(M, tm_)
    grid_n = pl.cdiv(n_pad, tn)
    grid_k = pl.cdiv(k_pad, tk)

    cost = pl.CostEstimate(
        flops=2 * M * k_pad * n_pad,
        transcendentals=0,
        bytes_accessed=(
            grid_n * M * k_pad * x_mm.dtype.itemsize        # x, re-read per N tile
            + grid_m * k_pad * n_pad * w_kn.dtype.itemsize  # weight, re-read per M tile
            + n_pad * b_row.dtype.itemsize                  # bias
            + M * n_pad * x.dtype.itemsize),                # output
    )

    y_padded = pl.pallas_call(
        _fc_kernel,
        out_shape=jax.ShapeDtypeStruct((M, n_pad), x.dtype),
        grid_spec=pltpu.PrefetchScalarGridSpec(
            num_scalar_prefetch=0,
            grid=(grid_m, grid_n, grid_k),
            in_specs=[
                pl.BlockSpec((tm_, tk), lambda i, j, k: (i, k)),   # x tile
                pl.BlockSpec((tk, tn), lambda i, j, k: (k, j)),    # weight tile
                pl.BlockSpec((1, tn), lambda i, j, k: (0, j)),     # bias tile
            ],
            out_specs=pl.BlockSpec((tm_, tn), lambda i, j, k: (i, j)),
            scratch_shapes=[pltpu.VMEM((tm_, tn), jnp.float32)],   # f32 accumulator
        ),
        compiler_params=pltpu.CompilerParams(
            # M and N shard across TensorCores (v7x megacore); K is the
            # sequential reduction axis (accumulator carried across it).
            dimension_semantics=("parallel", "parallel", "arbitrary"),
            vmem_limit_bytes=32 * 1024 * 1024,
        ),
        cost_estimate=cost,
    )(x_mm, w_kn, b_row)

    # Slice the lane-padded output back to the true N.
    y = y_padded[:, :n_out]
    return x, y


if __name__ == "__main__":
    key = jax.random.PRNGKey(0)
    k_x, k_w, k_b = jax.random.split(key, 3)

    # Input consistent with a >2D tensor fed to FC_xy: NCHW (2, 4, 16, 16)
    B, C, H, W = 2, 4, 16, 16
    nn_in = C * H * W          # 1024
    nn_out = 32

    x = jax.random.normal(k_x, (B, C, H, W), dtype=jnp.float32)

    # Deterministic PyTorch-like Linear init: U(-1/sqrt(nn_in), 1/sqrt(nn_in))
    bound = 1.0 / jnp.sqrt(jnp.float32(nn_in))
    weight = jax.random.uniform(k_w, (nn_out, nn_in), jnp.float32, -bound, bound)
    bias = jax.random.uniform(k_b, (nn_out,), jnp.float32, -bound, bound)

    # Pure-JAX reference.
    x_ref = x.reshape(B, -1)
    y_ref = x_ref @ weight.T + bias

    # ---- Fast path: bf16-packed weight (MXU-native, half the weight DMA) ----
    w_bf16, b_row = pack_fc_params(weight, bias, weight_dtype=jnp.bfloat16)
    x_flat, y = fc_xy(x, w_bf16, b_row, n_out=nn_out)
    jax.block_until_ready((x_flat, y))

    assert x_flat.shape == (B, nn_in) and y.shape == (B, nn_out)
    assert jnp.allclose(x_flat, x_ref)
    assert jnp.allclose(y, y_ref, atol=3e-2, rtol=3e-2)   # bf16 weight/x tolerance

    # ---- Reference-precision path: f32-packed weight ----
    w_f32, b_row32 = pack_fc_params(weight, bias, weight_dtype=jnp.float32)
    _, y32 = fc_xy(x, w_f32, b_row32, n_out=nn_out)
    jax.block_until_ready(y32)
    assert jnp.allclose(y32, y_ref, atol=1e-4, rtol=1e-4)

    print("KERNEL_OK")
</pallas_src>

<mosaic_0001>
module attributes {stable_mosaic.version = 11 : i64} {
  func.func @_fc_kernel(%arg0: i32, %arg1: i32, %arg2: i32, %arg3: memref<2x512xf32, #tpu.memory_space<vmem>>, %arg4: memref<512x256xbf16, #tpu.memory_space<vmem>>, %arg5: memref<1x256xf32, #tpu.memory_space<vmem>>, %arg6: memref<2x256xf32, #tpu.memory_space<vmem>>, %arg7: memref<2x256xf32, #tpu.memory_space<vmem>>) attributes {dimension_semantics = [#tpu.dimension_semantics<parallel>, #tpu.dimension_semantics<parallel>, #tpu.dimension_semantics<arbitrary>], iteration_bounds = array<i64: 1, 1, 2>, scalar_prefetch = 0 : i64, scratch_operands = 1 : i64, tpu.core_type = #tpu.core_type<tc>, window_params = [{transform_indices = @transform_0, window_bounds = array<i64: 2, 512>}, {transform_indices = @transform_1, window_bounds = array<i64: 512, 256>}, {transform_indices = @transform_2, window_bounds = array<i64: 1, 256>}, {transform_indices = @transform_3, window_bounds = array<i64: 2, 256>}]} {
    %c0_i32 = arith.constant 0 : i32
    %0 = arith.cmpi eq, %arg2, %c0_i32 : i32
    %1 = arith.extui %0 : i1 to i32
    %c0_i32_0 = arith.constant 0 : i32
    %2 = arith.cmpi ne, %1, %c0_i32_0 : i32
    scf.if %2 {
      %c0_9 = arith.constant 0 : index
      %c0_10 = arith.constant 0 : index
      %13 = vector.load %arg5[%c0_9, %c0_10] : memref<1x256xf32, #tpu.memory_space<vmem>>, vector<1x256xf32>
      %14 = vector.shape_cast %13 : vector<1x256xf32> to vector<1x256xf32>
      %15 = vector.broadcast %14 : vector<1x256xf32> to vector<2x256xf32>
      %c0_11 = arith.constant 0 : index
      %c0_12 = arith.constant 0 : index
      %16 = vector.load %arg7[%c0_11, %c0_12] : memref<2x256xf32, #tpu.memory_space<vmem>>, vector<2x256xf32>
      tpu.vector_store %arg7[%c0_11, %c0_12], %15 {strides = array<i32>} : memref<2x256xf32, #tpu.memory_space<vmem>>, vector<2x256xf32>,
    } else {
    }
    %c0 = arith.constant 0 : index
    %c0_1 = arith.constant 0 : index
    %3 = vector.load %arg4[%c0, %c0_1] : memref<512x256xbf16, #tpu.memory_space<vmem>>, vector<512x256xbf16>
    %c0_2 = arith.constant 0 : index
    %c0_3 = arith.constant 0 : index
    %4 = vector.load %arg3[%c0_2, %c0_3] : memref<2x512xf32, #tpu.memory_space<vmem>>, vector<2x512xf32>
    %5 = arith.truncf %4 : vector<2x512xf32> to vector<2x512xbf16>
    %c0_4 = arith.constant 0 : index
    %c0_5 = arith.constant 0 : index
    %6 = vector.load %arg7[%c0_4, %c0_5] : memref<2x256xf32, #tpu.memory_space<vmem>>, vector<2x256xf32>
    %cst = arith.constant dense<0.000000e+00> : vector<2x256xf32>
    %7 = tpu.matmul %5, %3, %cst {dimension_numbers = #tpu.dot_dimension_numbers<[1], [0], [0], [1], [0, 0, 1, 1], [], []>} : vector<2x512xbf16>, vector<512x256xbf16>, vector<2x256xf32> -> vector<2x256xf32>
    %8 = arith.addf %6, %7 : vector<2x256xf32>
    %c0_6 = arith.constant 0 : index
    %c0_7 = arith.constant 0 : index
    %9 = vector.load %arg7[%c0_6, %c0_7] : memref<2x256xf32, #tpu.memory_space<vmem>>, vector<2x256xf32>
    tpu.vector_store %arg7[%c0_6, %c0_7], %8 {strides = array<i32>} : memref<2x256xf32, #tpu.memory_space<vmem>>, vector<2x256xf32>,
    %c1_i32 = arith.constant 1 : i32
    %10 = arith.cmpi eq, %arg2, %c1_i32 : i32
    %11 = arith.extui %10 : i1 to i32
    %c0_i32_8 = arith.constant 0 : i32
    %12 = arith.cmpi ne, %11, %c0_i32_8 : i32
    scf.if %12 {
      %c0_9 = arith.constant 0 : index
      %c0_10 = arith.constant 0 : index
      %13 = vector.load %arg7[%c0_9, %c0_10] : memref<2x256xf32, #tpu.memory_space<vmem>>, vector<2x256xf32>
      %c0_11 = arith.constant 0 : index
      %c0_12 = arith.constant 0 : index
      %14 = vector.load %arg6[%c0_11, %c0_12] : memref<2x256xf32, #tpu.memory_space<vmem>>, vector<2x256xf32>
      tpu.vector_store %arg6[%c0_11, %c0_12], %13 {strides = array<i32>} : memref<2x256xf32, #tpu.memory_space<vmem>>, vector<2x256xf32>,
    } else {
    }
    return
  }
  func.func @transform_0(%arg0: i32, %arg1: i32, %arg2: i32) -> (i32, i32) {
    %c0_i32 = arith.constant 0 : i32
    return %arg0, %arg2 : i32, i32
  }
  func.func @transform_1(%arg0: i32, %arg1: i32, %arg2: i32) -> (i32, i32) {
    %c0_i32 = arith.constant 0 : i32
    return %arg2, %arg1 : i32, i32
  }
  func.func @transform_2(%arg0: i32, %arg1: i32, %arg2: i32) -> (i32, i32) {
    %c0_i32 = arith.constant 0 : i32
    %c0_i32_0 = arith.constant 0 : i32
    return %c0_i32, %arg1 : i32, i32
  }
  func.func @transform_3(%arg0: i32, %arg1: i32, %arg2: i32) -> (i32, i32) {
    %c0_i32 = arith.constant 0 : i32
    return %arg0, %arg1 : i32, i32
  }
}

</mosaic_0001>

<llo_original>
// kernel: fc_xy.1
$region0: #{fc_xy.1}
  #allocation0 [shape = 'u32[]', space=smem, size = 0x4, offset = 0x4, fixed_abs, tag = 'smem constant byte address 0x4 - core index']
  #allocation1 [shape = 'u32[144,128]{1,0:T(1,128)}', space=vmem, size = 0x12000, scoped, tag = 'internal scratch']
  #allocation2 [shape = 'f32[2,256]{1,0:T(2,128)}', space=vmem, size = 0x800, scoped, tag = 'scratch operand']
  %s0 = inlined_call_operand.vmem [shape: f32[2,1024], index: 0, kind: input, shape index: {}]
  %s1 = inlined_call_operand.hbm [shape: bf16[1024,256], index: 1, kind: input, shape index: {}]
  %s2 = inlined_call_operand.vmem [shape: f32[1,256], index: 2, kind: input, shape index: {}]
  %s3 = inlined_call_operand.vmem [shape: f32[2,256], index: 3, kind: output, shape index: {}]
  %s4 = sld [smem:[#allocation0]]
  $region57: #{fc_xy.1} parent=0
    _
  %s6 = ssub.s32 1, %s4
  %s7 = scalar_select 0, %s6, %s4
  $region1: #{fc_xy.1} parent=0
    #allocation3 [shape = 'u8[524288]{0}', space=vmem, size = 0x80000, scoped, tag = 'input window, operand 1']
    #allocation4 [shape = 's32[2]{0}', space=sflag, size = 0x8, scoped, tag = 'scoped memory for fc_xy.1']
    %8 = vsyncpa [#allocation4], 0
    %s9 = scalar_lea.sflag [#allocation4], 1
    %10 = vsyncpa %s9, 0
    loop: start=0, step=1, limit=4
    $region2: #{fc_xy.1} parent=1 // loop_pre_header
      _
    $region3: #{fc_xy.1} parent=1 // loop_header
      %s12 = sphi 0, %s16
      %p13 = scmp.ge.s32.totalorder %s12, 4
      %s19 = sphi 0, %s38
      %s20 = sphi 0, %s34
      %s21 = sphi 0, %s30
      %s22 = sphi 0, %s19
      %s23 = sphi 0, %s20
      %s24 = sphi 0, %s21
      %s25 = sphi 0, %s22
      %s26 = sphi 0, %s23
      %s27 = sphi 0, %s24
      %s43 = sphi 0, %s45
      %s46 = sphi 0, %s43
      %s47 = sphi 0, %s46
      %s63 = sphi 0, %s47
      %s71 = sphi 0, %s73
      %s74 = sphi 0, %s71
      %s75 = sphi 0, %s74
      %s91 = sphi 0, %s75
      %s97 = sphi 0, %s99
      %s100 = sphi 0, %s97
      %s101 = sphi 0, %s100
      %s117 = sphi 0, %s101
      %s125 = sphi 0, %s127
      %s128 = sphi 0, %s125
      %s129 = sphi 0, %s128
      %s145 = sphi 0, %s129
    $region4: #{fc_xy.1} parent=1 // loop_header_branch
      %15 = sbr.rel (%p13) target = $region8
    $region5: #{fc_xy.1} parent=1 // loop_body
      %s17 = ssub.s32 %s12, 1
      %s18 = ssub.s32 %s12, 2
      %s28 = sadd.s32 1, %s21
      %p29 = scmp.ge.s32.totalorder %s28, 2
      %s30 = scalar_select %p29, 0, %s28
      %s31 = sadd.s32 1, %s20
      %s32 = scalar_select %p29, %s31, %s20
      %p33 = scmp.ge.s32.totalorder %s32, 1
      %s34 = scalar_select %p33, 0, %s32
      %s35 = sadd.s32 1, %s19
      %s36 = scalar_select %p33, %s35, %s19
      %p37 = scmp.ge.s32.totalorder %s36, 1
      %s38 = scalar_select %p37, 0, %s36
      %s39 = ssub.s32 %s19, %s38
      %s40 = ssub.s32 %s21, %s30
      %s41 = sor.u32 %s39, %s40
      %p42 = scmp.eq.s32.totalorder %s41, 0
      %s44 = sadd.s32 %s43, 1
      %s45 = scalar_select %p42, %s43, %s44
      %p48 = pneg %p42
      %p49 = scmp.eq.s32.totalorder %s12, 1
      %p50 = por %p48, %p49
      %p51 = scmp.ne.s32.totalorder %s43, %s46
      %p52 = scmp.eq.s32.totalorder %s12, 0
      %p53 = por %p51, %p52
      %p54 = scmp.ne.s32.totalorder %s43, %s46
      %p55 = scmp.eq.s32.totalorder %s17, 1
      %p56 = por %p54, %p55
      %p57 = scmp.ne.s32.totalorder %s46, %s47
      %p58 = scmp.eq.s32.totalorder %s17, 0
      %p59 = por %p57, %p58
      %p60 = scmp.ne.s32.totalorder %s46, %s47
      %p61 = scmp.eq.s32.totalorder %s18, 1
      %p62 = por %p60, %p61
      %p64 = scmp.ne.s32.totalorder %s47, %s63
      %p65 = scmp.eq.s32.totalorder %s18, 0
      %p66 = por %p64, %p65
      %s67 = ssub.s32 %s21, %s30
      %s68 = ssub.s32 %s20, %s34
      %s69 = sor.u32 %s67, %s68
      %p70 = scmp.eq.s32.totalorder %s69, 0
      %s72 = sadd.s32 %s71, 1
      %s73 = scalar_select %p70, %s71, %s72
      %p76 = pneg %p70
      %p77 = scmp.eq.s32.totalorder %s12, 1
      %p78 = por %p76, %p77
      %p79 = scmp.ne.s32.totalorder %s71, %s74
      %p80 = scmp.eq.s32.totalorder %s12, 0
      %p81 = por %p79, %p80
      %p82 = scmp.ne.s32.totalorder %s71, %s74
      %p83 = scmp.eq.s32.totalorder %s17, 1
      %p84 = por %p82, %p83
      %p85 = scmp.ne.s32.totalorder %s74, %s75
      %p86 = scmp.eq.s32.totalorder %s17, 0
      %p87 = por %p85, %p86
      %p88 = scmp.ne.s32.totalorder %s74, %s75
      %p89 = scmp.eq.s32.totalorder %s18, 1
      %p90 = por %p88, %p89
      %p92 = scmp.ne.s32.totalorder %s75, %s91
      %p93 = scmp.eq.s32.totalorder %s18, 0
      %p94 = por %p92, %p93
      %s95 = ssub.s32 %s20, %s34
      %p96 = scmp.eq.s32.totalorder %s95, 0
      %s98 = sadd.s32 %s97, 1
      %s99 = scalar_select %p96, %s97, %s98
      %p102 = pneg %p96
      %p103 = scmp.eq.s32.totalorder %s12, 1
      %p104 = por %p102, %p103
      %p105 = scmp.ne.s32.totalorder %s97, %s100
      %p106 = scmp.eq.s32.totalorder %s12, 0
      %p107 = por %p105, %p106
      %p108 = scmp.ne.s32.totalorder %s97, %s100
      %p109 = scmp.eq.s32.totalorder %s17, 1
      %p110 = por %p108, %p109
      %p111 = scmp.ne.s32.totalorder %s100, %s101
      %p112 = scmp.eq.s32.totalorder %s17, 0
      %p113 = por %p111, %p112
      %p114 = scmp.ne.s32.totalorder %s100, %s101
      %p115 = scmp.eq.s32.totalorder %s18, 1
      %p116 = por %p114, %p115
      %p118 = scmp.ne.s32.totalorder %s101, %s117
      %p119 = scmp.eq.s32.totalorder %s18, 0
      %p120 = por %p118, %p119
      %s121 = ssub.s32 %s19, %s38
      %s122 = ssub.s32 %s20, %s34
      %s123 = sor.u32 %s121, %s122
      %p124 = scmp.eq.s32.totalorder %s123, 0
      %s126 = sadd.s32 %s125, 1
      %s127 = scalar_select %p124, %s125, %s126
      %p130 = pneg %p124
      %p131 = scmp.eq.s32.totalorder %s12, 1
      %p132 = por %p130, %p131
      %p133 = scmp.ne.s32.totalorder %s125, %s128
      %p134 = scmp.eq.s32.totalorder %s12, 0
      %p135 = por %p133, %p134
      %p136 = scmp.ne.s32.totalorder %s125, %s128
      %p137 = scmp.eq.s32.totalorder %s17, 1
      %p138 = por %p136, %p137
      %p139 = scmp.ne.s32.totalorder %s128, %s129
      %p140 = scmp.eq.s32.totalorder %s17, 0
      %p141 = por %p139, %p140
      %p142 = scmp.ne.s32.totalorder %s128, %s129
      %p143 = scmp.eq.s32.totalorder %s18, 1
      %p144 = por %p142, %p143
      %p146 = scmp.ne.s32.totalorder %s129, %s145
      %p147 = scmp.eq.s32.totalorder %s18, 0
      %p148 = por %p146, %p147
      %p149 = scmp.le.s32.totalorder 1, %s12
      %p150 = scmp.lt.s32.totalorder %s12, 3
      %p151 = pnand %p149, %p150
      %p152 = pneg %p151
      // Predicated region
      $region9: #{fc_xy.1} parent=5 // pred_check
        _
      $region10: #{fc_xy.1} parent=5 // pred_check_branch
        %154 = sbr.rel (%p151) target = $region12
      $region11: #{fc_xy.1} parent=5 // pred_region
        %s155 = ssub.s32 %s12, 1
        // Predicated region
        $region13: #{fc_xy.1} parent=11 // pred_check
          %p156 = pneg %p113
        $region14: #{fc_xy.1} parent=11 // pred_check_branch
          %158 = sbr.rel (%p156) target = $region16
        $region15: #{fc_xy.1} parent=11 // pred_region
          %s159 = smul.u32 2, %s23
          %p160 = scmp.lt.s32.totalorder %s159, 1
          %s161 = scalar_select %p160, %s159, 1
          %s162 = scalar_lea.vmem %s2, %s161
          %s163 = smul.u32 2, %s23
        $region16: #{fc_xy.1} parent=11 // pred_fallthru
          _
      $region12: #{fc_xy.1} parent=5 // pred_fallthru
        _
      %p164 = scmp.lt.s32.totalorder %s12, 2
      // Predicated region
      $region17: #{fc_xy.1} parent=5 // pred_check
        %p165 = pneg %p164
      $region18: #{fc_xy.1} parent=5 // pred_check_branch
        %167 = sbr.rel (%p165) target = $region20
      $region19: #{fc_xy.1} parent=5 // pred_region
        // Predicated region
        $region21: #{fc_xy.1} parent=19 // pred_check
          %p168 = pneg %p53
        $region22: #{fc_xy.1} parent=19 // pred_check_branch
          %170 = sbr.rel (%p168) target = $region24
        $region23: #{fc_xy.1} parent=19 // pred_region
          %s171 = smul.u32 4, %s21
          %p172 = scmp.lt.s32.totalorder %s19, 0
          %s173 = scalar_select %p172, %s19, 0
          %p174 = scmp.lt.s32.totalorder %s171, 7
          %s175 = scalar_select %p174, %s171, 7
          %s176 = smul.addr %s173, 8
          %s177 = sadd.s32 %s175, %s176
          %s178 = smul.addr %s177, 2
          %s179 = scalar_lea.vmem %s0, %s178
          %s180 = smul.u32 4, %s21
        $region24: #{fc_xy.1} parent=19 // pred_fallthru
          _
        // Predicated region
        $region25: #{fc_xy.1} parent=19 // pred_check
          %p181 = pneg %p81
        $region26: #{fc_xy.1} parent=19 // pred_check_branch
          %183 = sbr.rel (%p181) target = $region28
        $region27: #{fc_xy.1} parent=19 // pred_region
          %s184 = sand.u32 %s71, 1
          %s185 = scalar_lea.sflag [#allocation4], %s184
          %s186 = sand.u32 %s71, 1
          %s187 = smul.addr %s186, 512
          %s188 = scalar_lea.vmem [#allocation3], %s187
          %s189 = smul.u32 64, %s21
          %s190 = smul.u32 2, %s20
          %s192 = ssub.s32 8192, 8192
          %193 = vsyncadd %s185, %s192
          %s194 = smul.addr %s189, 2
          %s195 = sadd.s32 %s190, %s194
          %s196 = smul.addr %s195, 64
          %s197 = scalar_lea.hbm %s1, %s196
          %s198 = sshll.u32 %s188, 4
          %s199 = int_to_ptr.vmem [resolvable:$true] %s198
          %204 = dma.hbm_to_vmem [thread:$0]  %s197, 8192, %s199, %s185, 128, 128, 8
        $region28: #{fc_xy.1} parent=19 // pred_fallthru
          _
      $region20: #{fc_xy.1} parent=5 // pred_fallthru
        _
      %p205 = scmp.le.s32.totalorder 1, %s12
      %p206 = scmp.lt.s32.totalorder %s12, 3
      %p207 = pnand %p205, %p206
      %p208 = pneg %p207
      // Predicated region
      $region29: #{fc_xy.1} parent=5 // pred_check
        _
      $region30: #{fc_xy.1} parent=5 // pred_check_branch
        %210 = sbr.rel (%p207) target = $region32
      $region31: #{fc_xy.1} parent=5 // pred_region
        %s211 = ssub.s32 %s12, 1
        %s212 = sand.u32 %s74, 1
        %s213 = scalar_lea.sflag [#allocation4], %s212
        %s214 = sand.u32 %s74, 1
        %s215 = smul.addr %s214, 512
        %s216 = scalar_lea.vmem [#allocation3], %s215
        // Predicated region
        $region33: #{fc_xy.1} parent=31 // pred_check
          %p217 = pneg %p87
        $region34: #{fc_xy.1} parent=31 // pred_check_branch
          %219 = sbr.rel (%p217) target = $region36
        $region35: #{fc_xy.1} parent=31 // pred_region
          %220 = dma.done %s213, 8192
        $region36: #{fc_xy.1} parent=31 // pred_fallthru
          _
        %s221 = smul.u32 4, %s24
        %p222 = scmp.lt.s32.totalorder %s22, 0
        %s223 = scalar_select %p222, %s22, 0
        %p224 = scmp.lt.s32.totalorder %s221, 7
        %s225 = scalar_select %p224, %s221, 7
        %s226 = smul.addr %s223, 8
        %s227 = sadd.s32 %s225, %s226
        %s228 = smul.addr %s227, 2
        %s229 = scalar_lea.vmem %s0, %s228
        %p230 = pneg %p59
        %p231 = pneg %p56
        %s232 = sand.u32 %s74, 1
        %s233 = scalar_lea.sflag [#allocation4], %s232
        %s234 = sand.u32 %s74, 1
        %s235 = smul.addr %s234, 512
        %s236 = scalar_lea.vmem [#allocation3], %s235
        %p237 = pneg %p87
        %p238 = pneg %p84
        %s239 = smul.u32 2, %s23
        %p240 = scmp.lt.s32.totalorder %s239, 1
        %s241 = scalar_select %p240, %s239, 1
        %s242 = scalar_lea.vmem %s2, %s241
        %p243 = pneg %p113
        %p244 = pneg %p110
        %p245 = pneg %p141
        %p246 = pneg %p138
        %s247 = smul.u32 2, %s23
        %p248 = scmp.lt.s32.totalorder %s22, 0
        %s249 = scalar_select %p248, %s22, 0
        %p250 = scmp.lt.s32.totalorder %s247, 1
        %s251 = scalar_select %p250, %s247, 1
        %s252 = smul.addr %s249, 2
        %s253 = sadd.s32 %s251, %s252
        %s254 = smul.addr %s253, 2
        %s255 = scalar_lea.vmem %s3, %s254
        %s256 = smul.u32 4, %s24
        %p257 = scmp.lt.s32.totalorder %s22, 0
        %s258 = scalar_select %p257, %s22, 0
        %p259 = scmp.lt.s32.totalorder %s256, 7
        %s260 = scalar_select %p259, %s256, 7
        %s261 = smul.addr %s258, 8
        %s262 = sadd.s32 %s260, %s261
        %s263 = smul.addr %s262, 2
        %s264 = scalar_lea.vmem %s0, %s263
        %s265 = smul.u32 4, %s24
        %s266 = smul.u32 64, %s24
        %s267 = smul.u32 2, %s23
        %s268 = smul.u32 2, %s23
        %p269 = scmp.lt.s32.totalorder %s268, 1
        %s270 = scalar_select %p269, %s268, 1
        %s271 = scalar_lea.vmem %s2, %s270
        %s272 = smul.u32 2, %s23
        %s273 = smul.u32 2, %s23
        %p274 = scmp.lt.s32.totalorder %s22, 0
        %s275 = scalar_select %p274, %s22, 0
        %p276 = scmp.lt.s32.totalorder %s273, 1
        %s277 = scalar_select %p276, %s273, 1
        %s278 = smul.addr %s275, 2
        %s279 = sadd.s32 %s277, %s278
        %s280 = smul.addr %s279, 2
        %s281 = scalar_lea.vmem %s3, %s280
        %s282 = smul.u32 2, %s23
        %p283 = scmp.eq.s32.totalorder %s24, 0
        // Predicated region
        $region37: #{fc_xy.1} parent=31 // pred_check
          %p284 = pneg %p283
        $region38: #{fc_xy.1} parent=31 // pred_check_branch
          %286 = sbr.rel (%p284) target = $region40
        $region39: #{fc_xy.1} parent=31 // pred_region
          %v287 = vld [vmem:[%s271] sm:$0x3]
          %v289 = vlaneseq
          %v290 = vshrl.u32 %v289, 7
          %v291 = vsub.s32 0, %v290
          %v292 = vrot.slane %v287, %v291
          %v293 = vlaneseq
          %v294 = vshrl.u32 %v293, 7
          %v295 = vsub.s32 1, %v294
          %v296 = vrot.slane %v287, %v295
          %v297 = vcombine.low %v292, %v296
          %v299 = vunpack.c.l.s4 1983009808
          %v300 = vunpack.c.0.s8 %v299
          %v301 = vlaneseq
          %v302 = vshrl.u32 %v301, 7
          %v303 = vsub.s32 %v300, %v302
          %v304 = vrot.slane %v297, %v303
          %306 = vst [vmem:[#allocation2] sm:$0xf] %v304
        $region40: #{fc_xy.1} parent=31 // pred_fallthru
          _
        %v307 = vld [vmem:[%s216] sm:$0xff]
        %v308 = vld [vmem:[%s216 + $0x8] sm:$0xff]
        %v309 = vld [vmem:[%s216 + $0x10] sm:$0xff]
        %v310 = vld [vmem:[%s216 + $0x18] sm:$0xff]
        %v311 = vld [vmem:[%s216 + $0x20] sm:$0xff]
        %v312 = vld [vmem:[%s216 + $0x28] sm:$0xff]
        %v313 = vld [vmem:[%s216 + $0x30] sm:$0xff]
        %v314 = vld [vmem:[%s216 + $0x38] sm:$0xff]
        %v315 = vld [vmem:[%s216 + $0x40] sm:$0xff]
        %v316 = vld [vmem:[%s216 + $0x48] sm:$0xff]
        %v317 = vld [vmem:[%s216 + $0x50] sm:$0xff]
        %v318 = vld [vmem:[%s216 + $0x58] sm:$0xff]
        %v319 = vld [vmem:[%s216 + $0x60] sm:$0xff]
        %v320 = vld [vmem:[%s216 + $0x68] sm:$0xff]
        %v321 = vld [vmem:[%s216 + $0x70] sm:$0xff]
        %v322 = vld [vmem:[%s216 + $0x78] sm:$0xff]
        %v323 = vld [vmem:[%s216 + $0x80] sm:$0xff]
        %v324 = vld [vmem:[%s216 + $0x88] sm:$0xff]
        %v325 = vld [vmem:[%s216 + $0x90] sm:$0xff]
        %v326 = vld [vmem:[%s216 + $0x98] sm:$0xff]
        %v327 = vld [vmem:[%s216 + $0xa0] sm:$0xff]
        %v328 = vld [vmem:[%s216 + $0xa8] sm:$0xff]
        %v329 = vld [vmem:[%s216 + $0xb0] sm:$0xff]
        %v330 = vld [vmem:[%s216 + $0xb8] sm:$0xff]
        %v331 = vld [vmem:[%s216 + $0xc0] sm:$0xff]
        %v332 = vld [vmem:[%s216 + $0xc8] sm:$0xff]
        %v333 = vld [vmem:[%s216 + $0xd0] sm:$0xff]
        %v334 = vld [vmem:[%s216 + $0xd8] sm:$0xff]
        %v335 = vld [vmem:[%s216 + $0xe0] sm:$0xff]
        %v336 = vld [vmem:[%s216 + $0xe8] sm:$0xff]
        %v337 = vld [vmem:[%s216 + $0xf0] sm:$0xff]
        %v338 = vld [vmem:[%s216 + $0xf8] sm:$0xff]
        %v339 = vld [vmem:[%s216 + $0x100] sm:$0xff]
        %v340 = vld [vmem:[%s216 + $0x108] sm:$0xff]
        %v341 = vld [vmem:[%s216 + $0x110] sm:$0xff]
        %v342 = vld [vmem:[%s216 + $0x118] sm:$0xff]
        %v343 = vld [vmem:[%s216 + $0x120] sm:$0xff]
        %v344 = vld [vmem:[%s216 + $0x128] sm:$0xff]
        %v345 = vld [vmem:[%s216 + $0x130] sm:$0xff]
        %v346 = vld [vmem:[%s216 + $0x138] sm:$0xff]
        %v347 = vld [vmem:[%s216 + $0x140] sm:$0xff]
        %v348 = vld [vmem:[%s216 + $0x148] sm:$0xff]
        %v349 = vld [vmem:[%s216 + $0x150] sm:$0xff]
        %v350 = vld [vmem:[%s216 + $0x158] sm:$0xff]
        %v351 = vld [vmem:[%s216 + $0x160] sm:$0xff]
        %v352 = vld [vmem:[%s216 + $0x168] sm:$0xff]
        %v353 = vld [vmem:[%s216 + $0x170] sm:$0xff]
        %v354 = vld [vmem:[%s216 + $0x178] sm:$0xff]
        %v355 = vld [vmem:[%s216 + $0x180] sm:$0xff]
        %v356 = vld [vmem:[%s216 + $0x188] sm:$0xff]
        %v357 = vld [vmem:[%s216 + $0x190] sm:$0xff]
        %v358 = vld [vmem:[%s216 + $0x198] sm:$0xff]
        %v359 = vld [vmem:[%s216 + $0x1a0] sm:$0xff]
        %v360 = vld [vmem:[%s216 + $0x1a8] sm:$0xff]
        %v361 = vld [vmem:[%s216 + $0x1b0] sm:$0xff]
        %v362 = vld [vmem:[%s216 + $0x1b8] sm:$0xff]
        %v363 = vld [vmem:[%s216 + $0x1c0] sm:$0xff]
        %v364 = vld [vmem:[%s216 + $0x1c8] sm:$0xff]
        %v365 = vld [vmem:[%s216 + $0x1d0] sm:$0xff]
        %v366 = vld [vmem:[%s216 + $0x1d8] sm:$0xff]
        %v367 = vld [vmem:[%s216 + $0x1e0] sm:$0xff]
        %v368 = vld [vmem:[%s216 + $0x1e8] sm:$0xff]
        %v369 = vld [vmem:[%s216 + $0x1f0] sm:$0xff]
        %v370 = vld [vmem:[%s216 + $0x1f8] sm:$0xff]
        %v371 = vld [vmem:[%s264] sm:$0xff]
        %v373 = vcombine.high %v371, %v371
        %v375 = vunpack.c.l.s4 1983009808
        %v376 = vunpack.c.0.s8 %v375
        %v377 = vlaneseq
        %v378 = vshrl.u32 %v377, 7
        %v379 = vsub.s32 %v376, %v378
        %v380 = vrot.slane %v371, %v379
        %v382 = vunpack.c.l.s4 1983009808
        %v383 = vunpack.c.0.s8 %v382
        %v384 = vlaneseq
        %v385 = vshrl.u32 %v384, 7
        %v386 = vsub.s32 %v383, %v385
        %v387 = vrot.slane %v373, %v386
        %v388 = vcombine.high %v380, %v380
        %v389 = vcombine.high %v387, %v387
        %v394 = vpack.c.bf16 %v380, %v380
        %v395 = vpack.c.bf16 %v388, %v388
        %v396 = vpack.c.bf16 %v387, %v387
        %v397 = vpack.c.bf16 %v389, %v389
        %v398 = vld [vmem:[#allocation2] sm:$0xf]
        %v463 = vunpack.c.l.b16 %v307
        %v464 = vunpack.c.h.b16 %v307
        %v465 = vunpack.c.l.b16 %v308
        %v466 = vunpack.c.h.b16 %v308
        %v467 = vunpack.c.l.b16 %v309
        %v468 = vunpack.c.h.b16 %v309
        %v469 = vunpack.c.l.b16 %v310
        %v470 = vunpack.c.h.b16 %v310
        %v471 = vunpack.c.l.b16 %v311
        %v472 = vunpack.c.h.b16 %v311
        %v473 = vunpack.c.l.b16 %v312
        %v474 = vunpack.c.h.b16 %v312
        %v475 = vunpack.c.l.b16 %v313
        %v476 = vunpack.c.h.b16 %v313
        %v477 = vunpack.c.l.b16 %v314
        %v478 = vunpack.c.h.b16 %v314
        %v479 = vunpack.c.l.b16 %v315
        %v480 = vunpack.c.h.b16 %v315
        %v481 = vunpack.c.l.b16 %v316
        %v482 = vunpack.c.h.b16 %v316
        %v483 = vunpack.c.l.b16 %v317
        %v484 = vunpack.c.h.b16 %v317
        %v485 = vunpack.c.l.b16 %v318
        %v486 = vunpack.c.h.b16 %v318
        %v487 = vunpack.c.l.b16 %v319
        %v488 = vunpack.c.h.b16 %v319
        %v489 = vunpack.c.l.b16 %v320
        %v490 = vunpack.c.h.b16 %v320
        %v491 = vunpack.c.l.b16 %v321
        %v492 = vunpack.c.h.b16 %v321
        %v493 = vunpack.c.l.b16 %v322
        %v494 = vunpack.c.h.b16 %v322
        %v495 = vunpack.c.l.b16 %v323
        %v496 = vunpack.c.h.b16 %v323
        %v497 = vunpack.c.l.b16 %v324
        %v498 = vunpack.c.h.b16 %v324
        %v499 = vunpack.c.l.b16 %v325
        %v500 = vunpack.c.h.b16 %v325
        %v501 = vunpack.c.l.b16 %v326
        %v502 = vunpack.c.h.b16 %v326
        %v503 = vunpack.c.l.b16 %v327
        %v504 = vunpack.c.h.b16 %v327
        %v505 = vunpack.c.l.b16 %v328
        %v506 = vunpack.c.h.b16 %v328
        %v507 = vunpack.c.l.b16 %v329
        %v508 = vunpack.c.h.b16 %v329
        %v509 = vunpack.c.l.b16 %v330
        %v510 = vunpack.c.h.b16 %v330
        %v511 = vunpack.c.l.b16 %v331
        %v512 = vunpack.c.h.b16 %v331
        %v513 = vunpack.c.l.b16 %v332
        %v514 = vunpack.c.h.b16 %v332
        %v515 = vunpack.c.l.b16 %v333
        %v516 = vunpack.c.h.b16 %v333
        %v517 = vunpack.c.l.b16 %v334
        %v518 = vunpack.c.h.b16 %v334
        %v519 = vunpack.c.l.b16 %v335
        %v520 = vunpack.c.h.b16 %v335
        %v521 = vunpack.c.l.b16 %v336
        %v522 = vunpack.c.h.b16 %v336
        %v523 = vunpack.c.l.b16 %v337
        %v524 = vunpack.c.h.b16 %v337
        %v525 = vunpack.c.l.b16 %v338
        %v526 = vunpack.c.h.b16 %v338
        %v527 = vunpack.c.l.b16 %v339
        %v528 = vunpack.c.h.b16 %v339
        %v529 = vunpack.c.l.b16 %v340
        %v530 = vunpack.c.h.b16 %v340
        %v531 = vunpack.c.l.b16 %v341
        %v532 = vunpack.c.h.b16 %v341
        %v533 = vunpack.c.l.b16 %v342
        %v534 = vunpack.c.h.b16 %v342
        %v535 = vunpack.c.l.b16 %v343
        %v536 = vunpack.c.h.b16 %v343
        %v537 = vunpack.c.l.b16 %v344
        %v538 = vunpack.c.h.b16 %v344
        %v539 = vunpack.c.l.b16 %v345
        %v540 = vunpack.c.h.b16 %v345
        %v541 = vunpack.c.l.b16 %v346
        %v542 = vunpack.c.h.b16 %v346
        %v543 = vunpack.c.l.b16 %v347
        %v544 = vunpack.c.h.b16 %v347
        %v545 = vunpack.c.l.b16 %v348
        %v546 = vunpack.c.h.b16 %v348
        %v547 = vunpack.c.l.b16 %v349
        %v548 = vunpack.c.h.b16 %v349
        %v549 = vunpack.c.l.b16 %v350
        %v550 = vunpack.c.h.b16 %v350
        %v551 = vunpack.c.l.b16 %v351
        %v552 = vunpack.c.h.b16 %v351
        %v553 = vunpack.c.l.b16 %v352
        %v554 = vunpack.c.h.b16 %v352
        %v555 = vunpack.c.l.b16 %v353
        %v556 = vunpack.c.h.b16 %v353
        %v557 = vunpack.c.l.b16 %v354
        %v558 = vunpack.c.h.b16 %v354
        %v559 = vunpack.c.l.b16 %v355
        %v560 = vunpack.c.h.b16 %v355
        %v561 = vunpack.c.l.b16 %v356
        %v562 = vunpack.c.h.b16 %v356
        %v563 = vunpack.c.l.b16 %v357
        %v564 = vunpack.c.h.b16 %v357
        %v565 = vunpack.c.l.b16 %v358
        %v566 = vunpack.c.h.b16 %v358
        %v567 = vunpack.c.l.b16 %v359
        %v568 = vunpack.c.h.b16 %v359
        %v569 = vunpack.c.l.b16 %v360
        %v570 = vunpack.c.h.b16 %v360
        %v571 = vunpack.c.l.b16 %v361
        %v572 = vunpack.c.h.b16 %v361
        %v573 = vunpack.c.l.b16 %v362
        %v574 = vunpack.c.h.b16 %v362
        %v575 = vunpack.c.l.b16 %v363
        %v576 = vunpack.c.h.b16 %v363
        %v577 = vunpack.c.l.b16 %v364
        %v578 = vunpack.c.h.b16 %v364
        %v579 = vunpack.c.l.b16 %v365
        %v580 = vunpack.c.h.b16 %v365
        %v581 = vunpack.c.l.b16 %v366
        %v582 = vunpack.c.h.b16 %v366
        %v583 = vunpack.c.l.b16 %v367
        %v584 = vunpack.c.h.b16 %v367
        %v585 = vunpack.c.l.b16 %v368
        %v586 = vunpack.c.h.b16 %v368
        %v587 = vunpack.c.l.b16 %v369
        %v588 = vunpack.c.h.b16 %v369
        %v589 = vunpack.c.l.b16 %v370
        %v590 = vunpack.c.h.b16 %v370
        %v591 = vpack.c.b16 %v465, %v463
        %v592 = vpack.c.b16 %v466, %v464
        %v593 = vpack.c.b16 %v469, %v467
        %v594 = vpack.c.b16 %v470, %v468
        %v595 = vpack.c.b16 %v473, %v471
        %v596 = vpack.c.b16 %v474, %v472
        %v597 = vpack.c.b16 %v477, %v475
        %v598 = vpack.c.b16 %v478, %v476
        %v599 = vpack.c.b16 %v481, %v479
        %v600 = vpack.c.b16 %v482, %v480
        %v601 = vpack.c.b16 %v485, %v483
        %v602 = vpack.c.b16 %v486, %v484
        %v603 = vpack.c.b16 %v489, %v487
        %v604 = vpack.c.b16 %v490, %v488
        %v605 = vpack.c.b16 %v493, %v491
        %v606 = vpack.c.b16 %v494, %v492
        %v607 = vpack.c.b16 %v497, %v495
        %v608 = vpack.c.b16 %v498, %v496
        %v609 = vpack.c.b16 %v501, %v499
        %v610 = vpack.c.b16 %v502, %v500
        %v611 = vpack.c.b16 %v505, %v503
        %v612 = vpack.c.b16 %v506, %v504
        %v613 = vpack.c.b16 %v509, %v507
        %v614 = vpack.c.b16 %v510, %v508
        %v615 = vpack.c.b16 %v513, %v511
        %v616 = vpack.c.b16 %v514, %v512
        %v617 = vpack.c.b16 %v517, %v515
        %v618 = vpack.c.b16 %v518, %v516
        %v619 = vpack.c.b16 %v521, %v519
        %v620 = vpack.c.b16 %v522, %v520
        %v621 = vpack.c.b16 %v525, %v523
        %v622 = vpack.c.b16 %v526, %v524
        %v623 = vpack.c.b16 %v529, %v527
        %v624 = vpack.c.b16 %v530, %v528
        %v625 = vpack.c.b16 %v533, %v531
        %v626 = vpack.c.b16 %v534, %v532
        %v627 = vpack.c.b16 %v537, %v535
        %v628 = vpack.c.b16 %v538, %v536
        %v629 = vpack.c.b16 %v541, %v539
        %v630 = vpack.c.b16 %v542, %v540
        %v631 = vpack.c.b16 %v545, %v543
        %v632 = vpack.c.b16 %v546, %v544
        %v633 = vpack.c.b16 %v549, %v547
        %v634 = vpack.c.b16 %v550, %v548
        %v635 = vpack.c.b16 %v553, %v551
        %v636 = vpack.c.b16 %v554, %v552
        %v637 = vpack.c.b16 %v557, %v555
        %v638 = vpack.c.b16 %v558, %v556
        %v639 = vpack.c.b16 %v561, %v559
        %v640 = vpack.c.b16 %v562, %v560
        %v641 = vpack.c.b16 %v565, %v563
        %v642 = vpack.c.b16 %v566, %v564
        %v643 = vpack.c.b16 %v569, %v567
        %v644 = vpack.c.b16 %v570, %v568
        %v645 = vpack.c.b16 %v573, %v571
        %v646 = vpack.c.b16 %v574, %v572
        %v647 = vpack.c.b16 %v577, %v575
        %v648 = vpack.c.b16 %v578, %v576
        %v649 = vpack.c.b16 %v581, %v579
        %v650 = vpack.c.b16 %v582, %v580
        %v651 = vpack.c.b16 %v585, %v583
        %v652 = vpack.c.b16 %v586, %v584
        %v653 = vpack.c.b16 %v589, %v587
        %v654 = vpack.c.b16 %v590, %v588
        %719 = vmatprep.subr.bf16.mxu0 %v592
        %720 = vmatpush1.bf16.msra.mxu0 %v591
        %721 = vmatprep.subr.bf16.mxu0 %v594
        %722 = vmatpush1.bf16.msra.mxu0 %v593
        %723 = vmatprep.subr.bf16.mxu0 %v596
        %724 = vmatpush1.bf16.msra.mxu0 %v595
        %725 = vmatprep.subr.bf16.mxu0 %v598
        %726 = vmatpush1.bf16.msra.mxu0 %v597
        %727 = vmatprep.subr.bf16.mxu0 %v600
        %728 = vmatpush1.bf16.msra.mxu0 %v599
        %729 = vmatprep.subr.bf16.mxu0 %v602
        %730 = vmatpush1.bf16.msra.mxu0 %v601
        %731 = vmatprep.subr.bf16.mxu0 %v604
        %732 = vmatpush1.bf16.msra.mxu0 %v603
        %733 = vmatprep.subr.bf16.mxu0 %v606
        %734 = vmatpush1.bf16.msra.mxu0 %v605
        %735 = vmatprep.subr.bf16.mxu0 %v608
        %736 = vmatpush1.bf16.msra.mxu0 %v607
        %737 = vmatprep.subr.bf16.mxu0 %v610
        %738 = vmatpush1.bf16.msra.mxu0 %v609
        %739 = vmatprep.subr.bf16.mxu0 %v612
        %740 = vmatpush1.bf16.msra.mxu0 %v611
        %741 = vmatprep.subr.bf16.mxu0 %v614
        %742 = vmatpush1.bf16.msra.mxu0 %v613
        %743 = vmatprep.subr.bf16.mxu0 %v616
        %744 = vmatpush1.bf16.msra.mxu0 %v615
        %745 = vmatprep.subr.bf16.mxu0 %v618
        %746 = vmatpush1.bf16.msra.mxu0 %v617
        %747 = vmatprep.subr.bf16.mxu0 %v620
        %748 = vmatpush1.bf16.msra.mxu0 %v619
        %749 = vmatprep.subr.bf16.mxu0 %v622
        %750 = vmatpush1.bf16.msra.mxu0 %v621
        %751 = vmatprep.mubr.bf16.mxu0 %v395
        %752 = vmatmul.mubr.bf16.gmra.mrb[0].mxu0 %v394
        %v753 = vpop.f32.mrb[0].mxu0
        %v754 = vadd.f32 0.0, %v753
        %v755 = vpop.f32.mrb[0].mxu0
        %v756 = vadd.f32 0.0, %v755
        %v757 = vpop.f32.mrb[0].mxu0
        %v758 = vpop.f32.mrb[0].mxu0
        %759 = vdwg.mxu0
        %760 = vmatprep.subr.bf16.mxu0 %v624
        %761 = vmatpush1.bf16.msra.mxu0 %v623
        %762 = vmatprep.subr.bf16.mxu0 %v626
        %763 = vmatpush1.bf16.msra.mxu0 %v625
        %764 = vmatprep.subr.bf16.mxu0 %v628
        %765 = vmatpush1.bf16.msra.mxu0 %v627
        %766 = vmatprep.subr.bf16.mxu0 %v630
        %767 = vmatpush1.bf16.msra.mxu0 %v629
        %768 = vmatprep.subr.bf16.mxu0 %v632
        %769 = vmatpush1.bf16.msra.mxu0 %v631
        %770 = vmatprep.subr.bf16.mxu0 %v634
        %771 = vmatpush1.bf16.msra.mxu0 %v633
        %772 = vmatprep.subr.bf16.mxu0 %v636
        %773 = vmatpush1.bf16.msra.mxu0 %v635
        %774 = vmatprep.subr.bf16.mxu0 %v638
        %775 = vmatpush1.bf16.msra.mxu0 %v637
        %776 = vmatprep.subr.bf16.mxu0 %v640
        %777 = vmatpush1.bf16.msra.mxu0 %v639
        %778 = vmatprep.subr.bf16.mxu0 %v642
        %779 = vmatpush1.bf16.msra.mxu0 %v641
        %780 = vmatprep.subr.bf16.mxu0 %v644
        %781 = vmatpush1.bf16.msra.mxu0 %v643
        %782 = vmatprep.subr.bf16.mxu0 %v646
        %783 = vmatpush1.bf16.msra.mxu0 %v645
        %784 = vmatprep.subr.bf16.mxu0 %v648
        %785 = vmatpush1.bf16.msra.mxu0 %v647
        %786 = vmatprep.subr.bf16.mxu0 %v650
        %787 = vmatpush1.bf16.msra.mxu0 %v649
        %788 = vmatprep.subr.bf16.mxu0 %v652
        %789 = vmatpush1.bf16.msra.mxu0 %v651
        %790 = vmatprep.subr.bf16.mxu0 %v654
        %791 = vmatpush1.bf16.msra.mxu0 %v653
        %792 = vmatprep.mubr.bf16.mxu0 %v397
        %793 = vmatmul.mubr.bf16.gmra.mrb[0].mxu0 %v396
        %v794 = vpop.f32.mrb[0].mxu0
        %v795 = vadd.f32 %v754, %v794
        %v796 = vpop.f32.mrb[0].mxu0
        %v797 = vadd.f32 %v756, %v796
        %v798 = vpop.f32.mrb[0].mxu0
        %v799 = vpop.f32.mrb[0].mxu0
        %800 = vdwg.mxu0
        %v803 = vcombine.low %v795, %v797
        %v805 = vunpack.c.l.s4 1983009808
        %v806 = vunpack.c.0.s8 %v805
        %v807 = vlaneseq
        %v808 = vshrl.u32 %v807, 7
        %v809 = vsub.s32 %v806, %v808
        %v810 = vrot.slane %v803, %v809
        %v812 = vadd.f32 %v398, %v810
        %813 = vst [vmem:[#allocation2] sm:$0xf] %v812
        %p814 = scmp.eq.s32.totalorder %s24, 1
        // Predicated region
        $region41: #{fc_xy.1} parent=31 // pred_check
          %p815 = pneg %p814
        $region42: #{fc_xy.1} parent=31 // pred_check_branch
          %817 = sbr.rel (%p815) target = $region44
        $region43: #{fc_xy.1} parent=31 // pred_region
          %v818 = vld [vmem:[#allocation2] sm:$0xf]
          %819 = vst [vmem:[%s281] sm:$0xf] %v818
        $region44: #{fc_xy.1} parent=31 // pred_fallthru
          _
        %s820 = smul.u32 2, %s23
        %p821 = scmp.lt.s32.totalorder %s22, 0
        %s822 = scalar_select %p821, %s22, 0
        %p823 = scmp.lt.s32.totalorder %s820, 1
        %s824 = scalar_select %p823, %s820, 1
        %s825 = smul.addr %s822, 2
        %s826 = sadd.s32 %s824, %s825
        %s827 = smul.addr %s826, 2
        %s828 = scalar_lea.vmem %s3, %s827
        // Predicated region
        $region45: #{fc_xy.1} parent=31 // pred_check
          %p829 = pneg %p138
        $region46: #{fc_xy.1} parent=31 // pred_check_branch
          %831 = sbr.rel (%p829) target = $region48
        $region47: #{fc_xy.1} parent=31 // pred_region
          %s832 = smul.u32 2, %s23
        $region48: #{fc_xy.1} parent=31 // pred_fallthru
          _
        // Predicated region
        $region49: #{fc_xy.1} parent=31 // pred_check
          %p833 = pneg %p138
        $region50: #{fc_xy.1} parent=31 // pred_check_branch
          %835 = sbr.rel (%p833) target = $region52
        $region51: #{fc_xy.1} parent=31 // pred_region
          %s836 = smul.u32 2, %s23
          %p837 = scmp.lt.s32.totalorder %s22, 0
          %s838 = scalar_select %p837, %s22, 0
          %p839 = scmp.lt.s32.totalorder %s836, 1
          %s840 = scalar_select %p839, %s836, 1
          %s841 = smul.addr %s838, 2
          %s842 = sadd.s32 %s840, %s841
          %s843 = smul.addr %s842, 2
          %s844 = scalar_lea.vmem %s3, %s843
        $region52: #{fc_xy.1} parent=31 // pred_fallthru
          _
      $region32: #{fc_xy.1} parent=5 // pred_fallthru
        _
      %p845 = scmp.le.s32.totalorder 2, %s12
      // Predicated region
      $region53: #{fc_xy.1} parent=5 // pred_check
        %p846 = pneg %p845
      $region54: #{fc_xy.1} parent=5 // pred_check_branch
        %848 = sbr.rel (%p846) target = $region56
      $region55: #{fc_xy.1} parent=5 // pred_region
        %s849 = ssub.s32 %s12, 2
      $region56: #{fc_xy.1} parent=5 // pred_fallthru
        _
    $region6: #{fc_xy.1} parent=1 // loop_footer
      %s16 = sadd.s32 1, %s12
    $region7: #{fc_xy.1} parent=1 // loop_footer_branch
      %11 = sbr.rel target = $region3
    $region8: #{fc_xy.1} parent=1 // loop_exit
      _
    %850 = vsyncpa [#allocation4], 1
    %s851 = scalar_lea.sflag [#allocation4], 1
    %852 = vsyncpa %s851, 1

</llo_original>
